<compile_context>
chip_gen: v7x
topology: tpu7x:2x2x1
jax: 0.10.0
libtpu: 0.0.40
codegen_flags: <defaults>
</compile_context>

<pallas_src>
import functools

import jax
import jax.numpy as jnp
from jax import lax
from jax.experimental import pallas as pl
from jax.experimental.pallas import tpu as pltpu


def _center_loss_kernel(x_ref, lab_ref, centers_ref, out_ref, *, num_classes):
    """One grid step processes `tile_b` rows of x.

    x_ref       : (tile_b, D)  x tile in VMEM (BlockSpec-pipelined)
    lab_ref     : (tile_b, 1)  int32 labels tile in VMEM
    centers_ref : (C, D)       centers, resident in VMEM (constant block index)
    out_ref     : (1, 1)       f32 per-tile partial sum in SMEM
    """
    x = x_ref[...].astype(jnp.float32)                       # (tb, D)
    labels = lab_ref[...]                                     # (tb, 1) int32
    centers = centers_ref[...].astype(jnp.float32)            # (C, D)

    tb = x.shape[0]

    # One-hot gather of centers[labels] on the MXU (exact: 0/1 weights,
    # HIGHEST precision f32 matmul, f32 accumulation).
    classes = lax.broadcasted_iota(jnp.int32, (tb, num_classes), 1)
    one_hot = (labels == classes).astype(jnp.float32)          # (tb, C)
    gathered = jnp.dot(one_hot, centers,
                       preferred_element_type=jnp.float32,
                       precision=lax.Precision.HIGHEST)        # (tb, D)

    d = x - gathered
    row_sq = jnp.sum(d * d, axis=1, keepdims=True)             # (tb, 1)
    row_sq = jnp.clip(row_sq, 1e-12, 1e12)                     # clamp surviving entry

    # Out-of-range labels: PyTorch produces an all-zero mask row, so that row's
    # "surviving" contribution is just another 1e-12 clamp floor.
    valid = (labels >= 0) & (labels < num_classes)              # (tb, 1)
    contrib = jnp.where(valid, row_sq, jnp.float32(1e-12))

    out_ref[0, 0] = jnp.sum(contrib)


def _pick_tile_b(batch_size, feat_dim, num_classes, x_itemsize, c_itemsize,
                 budget_bytes):
    """Largest row tile that keeps (resident centers + pipelined x tiles +
    one-hot + gathered rows) under the VMEM budget. Prefers a single grid step."""
    resident = 2 * num_classes * feat_dim * c_itemsize   # centers (worst case 2 bufs)

    def est(tb):
        return (resident
                + 2 * tb * feat_dim * x_itemsize          # x double-buffer
                + 2 * tb * 4                               # labels double-buffer
                + tb * num_classes * 4                     # one-hot
                + 2 * tb * feat_dim * 4                    # gathered + diff temps
                + (1 << 20))                               # slack

    candidates = [batch_size] + [t for t in (2048, 1024, 512, 256, 128, 64, 32, 16, 8)
                                 if t < batch_size]
    for tb in candidates:
        if batch_size % tb == 0 and est(tb) <= budget_bytes:
            return tb
    # TODO(synk): fall back to a center-chunked / DMA-gather path when centers
    # themselves exceed the VMEM budget (C*D too large to keep resident).
    return 8 if batch_size % 8 == 0 else batch_size


def center_loss(x, labels, centers, *, tile_b=None,
                vmem_budget_bytes=48 * 1024 * 1024):
    """x: (B, D), labels: (B,) int, centers: (C, D) with C == B -> scalar f32 loss."""
    batch_size, feat_dim = x.shape
    num_classes = labels.shape[0]
    assert num_classes == batch_size, (
        "Original PyTorch code requires labels.shape[0] == batch_size")
    assert centers.shape == (num_classes, feat_dim)

    if tile_b is None:
        tile_b = _pick_tile_b(batch_size, feat_dim, num_classes,
                              jnp.dtype(x.dtype).itemsize,
                              jnp.dtype(centers.dtype).itemsize,
                              vmem_budget_bytes)
    assert batch_size % tile_b == 0
    num_tiles = batch_size // tile_b

    lab2d = labels.astype(jnp.int32).reshape(batch_size, 1)

    kernel = functools.partial(_center_loss_kernel, num_classes=num_classes)

    grid_spec = pltpu.PrefetchScalarGridSpec(
        num_scalar_prefetch=0,
        grid=(num_tiles,),
        in_specs=[
            # x: streamed row tiles (native dtype, cast in-kernel).
            pl.BlockSpec((tile_b, feat_dim), lambda i: (i, 0)),
            # labels: matching row tiles.
            pl.BlockSpec((tile_b, 1), lambda i: (i, 0)),
            # centers: resident in VMEM across the whole grid (DMA'd once).
            pl.BlockSpec((num_classes, feat_dim), lambda i: (0, 0)),
        ],
        out_specs=pl.BlockSpec((1, 1), lambda i: (i, 0),
                               memory_space=pltpu.MemorySpace.SMEM),
    )

    partials = pl.pallas_call(
        kernel,
        out_shape=jax.ShapeDtypeStruct((num_tiles, 1), jnp.float32),
        grid_spec=grid_spec,
        compiler_params=pltpu.CompilerParams(
            # No carried state -> grid axis can shard across v7x's two cores.
            dimension_semantics=("parallel",),
            # v7x-safe (64 MiB physical); plenty on v5e/v6e.
            vmem_limit_bytes=56 * 1024 * 1024,
        ),
    )(x, lab2d, centers)

    # Every masked-out distmat entry contributes clamp(0, 1e-12, 1e12) = 1e-12.
    floor = jnp.float32(float(batch_size) * float(num_classes - 1) * 1e-12)
    return (jnp.sum(partials) + floor) / jnp.float32(batch_size)


def _reference(x, labels, centers):
    batch_size, _ = x.shape
    num_classes = labels.shape[0]
    xf = x.astype(jnp.float32)
    cf = centers.astype(jnp.float32)
    distmat = (jnp.sum(xf ** 2, axis=1, keepdims=True)
               + jnp.sum(cf ** 2, axis=1)[None, :]
               - 2.0 * xf @ cf.T)
    mask = (labels[:, None] == jnp.arange(num_classes)[None, :]).astype(jnp.float32)
    dist = jnp.clip(distmat * mask, 1e-12, 1e12)
    return jnp.sum(dist) / batch_size


if __name__ == "__main__":
    key = jax.random.PRNGKey(0)
    kx, kc, kl = jax.random.split(key, 3)

    # Case 1: small shapes (batch == num_classes is required by the original
    # .expand() hack); single grid step.
    batch_size = 8
    feat_dim = 32
    num_classes = batch_size

    x = jax.random.normal(kx, (batch_size, feat_dim), dtype=jnp.float32)
    centers = jax.random.normal(kc, (num_classes, feat_dim), dtype=jnp.float32)
    labels = jax.random.randint(kl, (num_classes,), 0, num_classes, dtype=jnp.int32)

    loss = center_loss(x, labels, centers)
    jax.block_until_ready(loss)
    ref = _reference(x, labels, centers)
    assert jnp.allclose(loss, ref, rtol=1e-5, atol=1e-5), (loss, ref)

    # Case 2: multiple grid steps -> exercises the per-tile partial outputs and
    # the parallel grid axis.
    k2x, k2c, k2l = jax.random.split(jax.random.PRNGKey(1), 3)
    b2, d2 = 64, 128
    x2 = jax.random.normal(k2x, (b2, d2), dtype=jnp.float32)
    c2 = jax.random.normal(k2c, (b2, d2), dtype=jnp.float32)
    l2 = jax.random.randint(k2l, (b2,), 0, b2, dtype=jnp.int32)
    loss2 = center_loss(x2, l2, c2, tile_b=16)
    jax.block_until_ready(loss2)
    ref2 = _reference(x2, l2, c2)
    assert jnp.allclose(loss2, ref2, rtol=1e-5, atol=1e-5), (loss2, ref2)

    # Case 3: out-of-range labels behave like PyTorch (all-zero mask row).
    l3 = l2.at[0].set(b2 + 5).at[1].set(-3)
    loss3 = center_loss(x2, l3, c2, tile_b=16)
    jax.block_until_ready(loss3)
    ref3 = _reference(x2, l3, c2)
    assert jnp.allclose(loss3, ref3, rtol=1e-5, atol=1e-5), (loss3, ref3)

    print("KERNEL_OK")
</pallas_src>

<mosaic_0001>
module attributes {stable_mosaic.version = 11 : i64} {
  func.func @_center_loss_kernel(%arg0: i32, %arg1: memref<8x32xf32, #tpu.memory_space<vmem>>, %arg2: memref<8x1xi32, #tpu.memory_space<vmem>>, %arg3: memref<8x32xf32, #tpu.memory_space<vmem>>, %arg4: memref<1x1xf32, #tpu.memory_space<smem>>) attributes {dimension_semantics = [#tpu.dimension_semantics<parallel>], iteration_bounds = array<i64: 1>, scalar_prefetch = 0 : i64, scratch_operands = 0 : i64, tpu.core_type = #tpu.core_type<tc>, window_params = [{transform_indices = @transform_0, window_bounds = array<i64: 8, 32>}, {transform_indices = @transform_1, window_bounds = array<i64: 8, 1>}, {pipeline_mode = #tpu.pipeline_mode<synchronous>, transform_indices = @transform_2, window_bounds = array<i64: 8, 32>}, {transform_indices = @transform_3, window_bounds = array<i64: 1, 1>}]} {
    %c0 = arith.constant 0 : index
    %c0_0 = arith.constant 0 : index
    %0 = vector.load %arg1[%c0, %c0_0] : memref<8x32xf32, #tpu.memory_space<vmem>>, vector<8x32xf32>
    %c0_1 = arith.constant 0 : index
    %c0_2 = arith.constant 0 : index
    %1 = vector.load %arg2[%c0_1, %c0_2] : memref<8x1xi32, #tpu.memory_space<vmem>>, vector<8x1xi32>
    %c0_3 = arith.constant 0 : index
    %c0_4 = arith.constant 0 : index
    %2 = vector.load %arg3[%c0_3, %c0_4] : memref<8x32xf32, #tpu.memory_space<vmem>>, vector<8x32xf32>
    %3 = tpu.iota {dimensions = array<i32: 1>} : vector<8x8xi32>
    %4 = vector.broadcast %1 : vector<8x1xi32> to vector<8x8xi32>
    %5 = arith.cmpi eq, %4, %3 : vector<8x8xi32>
    %6 = arith.extui %5 : vector<8x8xi1> to vector<8x8xi32>
    %7 = arith.sitofp %6 : vector<8x8xi32> to vector<8x8xf32>
    %cst = arith.constant dense<0.000000e+00> : vector<8x32xf32>
    %8 = tpu.matmul %7, %2, %cst {dimension_numbers = #tpu.dot_dimension_numbers<[1], [0], [0], [1], [0, 0, 1, 1], [], []>, precision = #tpu.contract_precision<fp32>} : vector<8x8xf32>, vector<8x32xf32>, vector<8x32xf32> -> vector<8x32xf32>
    %9 = arith.subf %0, %8 : vector<8x32xf32>
    %10 = arith.mulf %9, %9 : vector<8x32xf32>
    %cst_5 = arith.constant dense<0.000000e+00> : vector<8xf32>
    %11 = vector.multi_reduction <add>, %10, %cst_5 [1] : vector<8x32xf32> to vector<8xf32>
    %12 = vector.shape_cast %11 : vector<8xf32> to vector<8x1xf32>
    %cst_6 = arith.constant 9.99999996E-13 : f32
    %cst_7 = arith.constant 9.99999995E+11 : f32
    %13 = vector.broadcast %cst_6 : f32 to vector<8x1xf32>
    %14 = arith.maximumf %13, %12 : vector<8x1xf32>
    %15 = vector.broadcast %cst_7 : f32 to vector<8x1xf32>
    %16 = arith.minimumf %15, %14 : vector<8x1xf32>
    %c0_i32 = arith.constant 0 : i32
    %17 = vector.broadcast %c0_i32 : i32 to vector<8x1xi32>
    %18 = arith.cmpi sge, %1, %17 : vector<8x1xi32>
    %c8_i32 = arith.constant 8 : i32
    %19 = vector.broadcast %c8_i32 : i32 to vector<8x1xi32>
    %20 = arith.cmpi slt, %1, %19 : vector<8x1xi32>
    %21 = arith.andi %18, %20 : vector<8x1xi1>
    %cst_8 = arith.constant 9.99999996E-13 : f32
    %22 = vector.broadcast %cst_8 : f32 to vector<8x1xf32>
    %23 = arith.select %21, %16, %22 : vector<8x1xi1>, vector<8x1xf32>
    %24 = vector.shape_cast %23 : vector<8x1xf32> to vector<1x8x1xf32>
    %cst_9 = arith.constant dense<0.000000e+00> : vector<1xf32>
    %25 = vector.multi_reduction <add>, %24, %cst_9 [1, 2] : vector<1x8x1xf32> to vector<1xf32>
    %26 = vector.shape_cast %25 : vector<1xf32> to vector<1x1x1xf32>
    %27 = vector.extract %26[0, 0, 0] : f32 from vector<1x1x1xf32>
    %c0_10 = arith.constant 0 : index
    %c0_11 = arith.constant 0 : index
    %28 = memref.load %arg4[%c0_10, %c0_11] : memref<1x1xf32, #tpu.memory_space<smem>>
    memref.store %27, %arg4[%c0_10, %c0_11] : memref<1x1xf32, #tpu.memory_space<smem>>
    return
  }
  func.func @transform_0(%arg0: i32) -> (i32, i32) {
    %c0_i32 = arith.constant 0 : i32
    %c0_i32_0 = arith.constant 0 : i32
    return %arg0, %c0_i32 : i32, i32
  }
  func.func @transform_1(%arg0: i32) -> (i32, i32) {
    %c0_i32 = arith.constant 0 : i32
    %c0_i32_0 = arith.constant 0 : i32
    return %arg0, %c0_i32 : i32, i32
  }
  func.func @transform_2(%arg0: i32) -> (i32, i32) {
    %c0_i32 = arith.constant 0 : i32
    %c0_i32_0 = arith.constant 0 : i32
    %c0_i32_1 = arith.constant 0 : i32
    return %c0_i32, %c0_i32_0 : i32, i32
  }
  func.func @transform_3(%arg0: i32) -> (i32, i32) {
    %c0_i32 = arith.constant 0 : i32
    %c0_i32_0 = arith.constant 0 : i32
    return %arg0, %c0_i32 : i32, i32
  }
}

</mosaic_0001>

<llo_original>
// kernel: tpu_custom_call.1
$region0: #{tpu_custom_call.1}
  #allocation0 [shape = 'u32[]', space=smem, size = 0x4, offset = 0x4, fixed_abs, tag = 'smem constant byte address 0x4 - core index']
  #allocation1 [shape = 'u32[144,128]{1,0:T(1,128)}', space=vmem, size = 0x12000, scoped, tag = 'internal scratch']
  %s0 = inlined_call_operand.vmem [shape: f32[8,32], index: 0, kind: input, shape index: {}]
  %s1 = inlined_call_operand.vmem [shape: s32[8,1], index: 1, kind: input, shape index: {}]
  %s2 = inlined_call_operand.vmem [shape: f32[8,32], index: 2, kind: input, shape index: {}]
  %s3 = inlined_call_operand.hbm [shape: f32[1,1], index: 3, kind: output, shape index: {}]
  %s4 = sld [smem:[#allocation0]]
  $region22: #{tpu_custom_call.1} parent=0
    _
  %s6 = ssub.s32 1, %s4
  %s7 = scalar_select 0, %s6, %s4
  $region1: #{tpu_custom_call.1} parent=0
    #allocation2 [shape = 'u8[512]{0}', space=smem, size = 0x200, scoped, tag = 'output window, operand 0, single buffered']
    #allocation3 [shape = 's32[1]{0}', space=sflag, size = 0x4, scoped, tag = 'scoped memory for tpu_custom_call.1']
    %8 = vsyncpa [#allocation3], 0
    // Predicated region
    $region2: #{tpu_custom_call.1} parent=1 // pred_check
      _
    $region3: #{tpu_custom_call.1} parent=1 // pred_check_branch
      %10 = sbr.rel (0) target = $region5
    $region4: #{tpu_custom_call.1} parent=1 // pred_region
      _
    $region5: #{tpu_custom_call.1} parent=1 // pred_fallthru
      _
    // Predicated region
    $region6: #{tpu_custom_call.1} parent=1 // pred_check
      _
    $region7: #{tpu_custom_call.1} parent=1 // pred_check_branch
      %12 = sbr.rel (0) target = $region9
    $region8: #{tpu_custom_call.1} parent=1 // pred_region
      _
    $region9: #{tpu_custom_call.1} parent=1 // pred_fallthru
      _
    // Predicated region
    $region10: #{tpu_custom_call.1} parent=1 // pred_check
      _
    $region11: #{tpu_custom_call.1} parent=1 // pred_check_branch
      %14 = sbr.rel (0) target = $region13
    $region12: #{tpu_custom_call.1} parent=1 // pred_region
      _
    $region13: #{tpu_custom_call.1} parent=1 // pred_fallthru
      _
    %v15 = vld [vmem:[%s0] sm:$0xff]
    %v16 = vld [vmem:[%s1] sm:$0xff]
    %v17 = vld [vmem:[%s2] sm:$0xff]
    %v18 = vlaneseq
    %v19 = vand.u32 %v18, 127
    %20 = vset.pattern.permute.xlu0 0
    %21 = vperm.xlu0 %20, %v16
    %v22 = vpop.permute.xlu0 %21
    %vm23 = vcmp.eq.s32.totalorder %v22, %v19
    %v24 = vsel %vm23, 1, 0
    %v25 = vcvt.s32.f32 %v24
    %vm26 = vcmask 64512
    %v28 = vsel %vm26, %v25, 0
    %30 = vmatprep.subr.mxu0 0.0
    %v31 = vand.u32 %v17, 4294901760
    %32 = vmatpush1.msra.mxu0 %v31
    %33 = vmatprep.subr.mxu0 0.0
    %34 = vmatpush1.msra.mxu0 0.0
    %35 = vmatprep.subr.mxu0 0.0
    %36 = vmatpush1.msra.mxu0 0.0
    %37 = vmatprep.subr.mxu0 0.0
    %38 = vmatpush1.msra.mxu0 0.0
    %39 = vmatprep.subr.mxu0 0.0
    %40 = vmatpush1.msra.mxu0 0.0
    %41 = vmatprep.subr.mxu0 0.0
    %42 = vmatpush1.msra.mxu0 0.0
    %43 = vmatprep.subr.mxu0 0.0
    %44 = vmatpush1.msra.mxu0 0.0
    %45 = vmatprep.subr.mxu0 0.0
    %46 = vmatpush1.msra.mxu0 0.0
    %47 = vmatprep.subr.mxu0 0.0
    %48 = vmatpush1.msra.mxu0 0.0
    %49 = vmatprep.subr.mxu0 0.0
    %50 = vmatpush1.msra.mxu0 0.0
    %51 = vmatprep.subr.mxu0 0.0
    %52 = vmatpush1.msra.mxu0 0.0
    %53 = vmatprep.subr.mxu0 0.0
    %54 = vmatpush1.msra.mxu0 0.0
    %55 = vmatprep.subr.mxu0 0.0
    %56 = vmatpush1.msra.mxu0 0.0
    %57 = vmatprep.subr.mxu0 0.0
    %58 = vmatpush1.msra.mxu0 0.0
    %59 = vmatprep.subr.mxu0 0.0
    %60 = vmatpush1.msra.mxu0 0.0
    %61 = vmatprep.subr.mxu0 0.0
    %62 = vmatpush1.msra.mxu0 0.0
    %63 = vmatprep.subr.mxu0 0.0
    %64 = vmatpush1.msra.mxu0 0.0
    %65 = vmatprep.subr.mxu0 0.0
    %66 = vmatpush1.msra.mxu0 0.0
    %67 = vmatprep.subr.mxu0 0.0
    %68 = vmatpush1.msra.mxu0 0.0
    %69 = vmatprep.subr.mxu0 0.0
    %70 = vmatpush1.msra.mxu0 0.0
    %71 = vmatprep.subr.mxu0 0.0
    %72 = vmatpush1.msra.mxu0 0.0
    %73 = vmatprep.subr.mxu0 0.0
    %74 = vmatpush1.msra.mxu0 0.0
    %75 = vmatprep.subr.mxu0 0.0
    %76 = vmatpush1.msra.mxu0 0.0
    %77 = vmatprep.subr.mxu0 0.0
    %78 = vmatpush1.msra.mxu0 0.0
    %79 = vmatprep.subr.mxu0 0.0
    %80 = vmatpush1.msra.mxu0 0.0
    %81 = vmatprep.subr.mxu0 0.0
    %82 = vmatpush1.msra.mxu0 0.0
    %83 = vmatprep.subr.mxu0 0.0
    %84 = vmatpush1.msra.mxu0 0.0
    %85 = vmatprep.subr.mxu0 0.0
    %86 = vmatpush1.msra.mxu0 0.0
    %87 = vmatprep.subr.mxu0 0.0
    %88 = vmatpush1.msra.mxu0 0.0
    %89 = vmatprep.subr.mxu0 0.0
    %90 = vmatpush1.msra.mxu0 0.0
    %91 = vmatprep.subr.mxu0 0.0
    %92 = vmatpush1.msra.mxu0 0.0
    %93 = vmatprep.subr.mxu0 0.0
    %94 = vmatpush1.msra.mxu0 0.0
    %95 = vmatprep.mubr.f32.mxu0 0.0
    %v96 = vand.u32 %v28, 4294901760
    %v97 = vsub.f32 %v28, %v96
    %v98 = vand.u32 %v97, 4294901760
    %v99 = vsub.f32 %v97, %v98
    %v100 = vand.u32 %v99, 4294901760
    %101 = vmatmul.mubr.f32.gmra.mrb[0].mxu0 %v100
    %v102 = vpop.f32.mrb[0].mxu0
    %v103 = vadd.f32 0.0, %v102
    %v104 = vpop.f32.mrb[0].mxu0
    %105 = vdwg.mxu0
    %106 = vmatprep.subr.mxu0 0.0
    %v107 = vand.u32 %v17, 4294901760
    %v108 = vsub.f32 %v17, %v107
    %v109 = vand.u32 %v108, 4294901760
    %v110 = vsub.f32 %v108, %v109
    %v111 = vand.u32 %v110, 4294901760
    %112 = vmatpush1.msra.mxu0 %v111
    %113 = vmatprep.subr.mxu0 0.0
    %114 = vmatpush1.msra.mxu0 0.0
    %115 = vmatprep.subr.mxu0 0.0
    %116 = vmatpush1.msra.mxu0 0.0
    %117 = vmatprep.subr.mxu0 0.0
    %118 = vmatpush1.msra.mxu0 0.0
    %119 = vmatprep.subr.mxu0 0.0
    %120 = vmatpush1.msra.mxu0 0.0
    %121 = vmatprep.subr.mxu0 0.0
    %122 = vmatpush1.msra.mxu0 0.0
    %123 = vmatprep.subr.mxu0 0.0
    %124 = vmatpush1.msra.mxu0 0.0
    %125 = vmatprep.subr.mxu0 0.0
    %126 = vmatpush1.msra.mxu0 0.0
    %127 = vmatprep.subr.mxu0 0.0
    %128 = vmatpush1.msra.mxu0 0.0
    %129 = vmatprep.subr.mxu0 0.0
    %130 = vmatpush1.msra.mxu0 0.0
    %131 = vmatprep.subr.mxu0 0.0
    %132 = vmatpush1.msra.mxu0 0.0
    %133 = vmatprep.subr.mxu0 0.0
    %134 = vmatpush1.msra.mxu0 0.0
    %135 = vmatprep.subr.mxu0 0.0
    %136 = vmatpush1.msra.mxu0 0.0
    %137 = vmatprep.subr.mxu0 0.0
    %138 = vmatpush1.msra.mxu0 0.0
    %139 = vmatprep.subr.mxu0 0.0
    %140 = vmatpush1.msra.mxu0 0.0
    %141 = vmatprep.subr.mxu0 0.0
    %142 = vmatpush1.msra.mxu0 0.0
    %143 = vmatprep.subr.mxu0 0.0
    %144 = vmatpush1.msra.mxu0 0.0
    %145 = vmatprep.subr.mxu0 0.0
    %146 = vmatpush1.msra.mxu0 0.0
    %147 = vmatprep.subr.mxu0 0.0
    %148 = vmatpush1.msra.mxu0 0.0
    %149 = vmatprep.subr.mxu0 0.0
    %150 = vmatpush1.msra.mxu0 0.0
    %151 = vmatprep.subr.mxu0 0.0
    %152 = vmatpush1.msra.mxu0 0.0
    %153 = vmatprep.subr.mxu0 0.0
    %154 = vmatpush1.msra.mxu0 0.0
    %155 = vmatprep.subr.mxu0 0.0
    %156 = vmatpush1.msra.mxu0 0.0
    %157 = vmatprep.subr.mxu0 0.0
    %158 = vmatpush1.msra.mxu0 0.0
    %159 = vmatprep.subr.mxu0 0.0
    %160 = vmatpush1.msra.mxu0 0.0
    %161 = vmatprep.subr.mxu0 0.0
    %162 = vmatpush1.msra.mxu0 0.0
    %163 = vmatprep.subr.mxu0 0.0
    %164 = vmatpush1.msra.mxu0 0.0
    %165 = vmatprep.subr.mxu0 0.0
    %166 = vmatpush1.msra.mxu0 0.0
    %167 = vmatprep.subr.mxu0 0.0
    %168 = vmatpush1.msra.mxu0 0.0
    %169 = vmatprep.subr.mxu0 0.0
    %170 = vmatpush1.msra.mxu0 0.0
    %171 = vmatprep.subr.mxu0 0.0
    %172 = vmatpush1.msra.mxu0 0.0
    %173 = vmatprep.subr.mxu0 0.0
    %174 = vmatpush1.msra.mxu0 0.0
    %175 = vmatprep.mubr.f32.mxu0 0.0
    %v176 = vand.u32 %v28, 4294901760
    %177 = vmatmul.mubr.f32.gmra.mrb[0].mxu0 %v176
    %v178 = vpop.f32.mrb[0].mxu0
    %v179 = vadd.f32 %v103, %v178
    %v180 = vpop.f32.mrb[0].mxu0
    %181 = vdwg.mxu0
    %182 = vmatprep.subr.mxu0 0.0
    %v183 = vand.u32 %v17, 4294901760
    %v184 = vsub.f32 %v17, %v183
    %185 = vmatpush1.msra.mxu0 %v184
    %186 = vmatprep.subr.mxu0 0.0
    %187 = vmatpush1.msra.mxu0 0.0
    %188 = vmatprep.subr.mxu0 0.0
    %189 = vmatpush1.msra.mxu0 0.0
    %190 = vmatprep.subr.mxu0 0.0
    %191 = vmatpush1.msra.mxu0 0.0
    %192 = vmatprep.subr.mxu0 0.0
    %193 = vmatpush1.msra.mxu0 0.0
    %194 = vmatprep.subr.mxu0 0.0
    %195 = vmatpush1.msra.mxu0 0.0
    %196 = vmatprep.subr.mxu0 0.0
    %197 = vmatpush1.msra.mxu0 0.0
    %198 = vmatprep.subr.mxu0 0.0
    %199 = vmatpush1.msra.mxu0 0.0
    %200 = vmatprep.subr.mxu0 0.0
    %201 = vmatpush1.msra.mxu0 0.0
    %202 = vmatprep.subr.mxu0 0.0
    %203 = vmatpush1.msra.mxu0 0.0
    %204 = vmatprep.subr.mxu0 0.0
    %205 = vmatpush1.msra.mxu0 0.0
    %206 = vmatprep.subr.mxu0 0.0
    %207 = vmatpush1.msra.mxu0 0.0
    %208 = vmatprep.subr.mxu0 0.0
    %209 = vmatpush1.msra.mxu0 0.0
    %210 = vmatprep.subr.mxu0 0.0
    %211 = vmatpush1.msra.mxu0 0.0
    %212 = vmatprep.subr.mxu0 0.0
    %213 = vmatpush1.msra.mxu0 0.0
    %214 = vmatprep.subr.mxu0 0.0
    %215 = vmatpush1.msra.mxu0 0.0
    %216 = vmatprep.subr.mxu0 0.0
    %217 = vmatpush1.msra.mxu0 0.0
    %218 = vmatprep.subr.mxu0 0.0
    %219 = vmatpush1.msra.mxu0 0.0
    %220 = vmatprep.subr.mxu0 0.0
    %221 = vmatpush1.msra.mxu0 0.0
    %222 = vmatprep.subr.mxu0 0.0
    %223 = vmatpush1.msra.mxu0 0.0
    %224 = vmatprep.subr.mxu0 0.0
    %225 = vmatpush1.msra.mxu0 0.0
    %226 = vmatprep.subr.mxu0 0.0
    %227 = vmatpush1.msra.mxu0 0.0
    %228 = vmatprep.subr.mxu0 0.0
    %229 = vmatpush1.msra.mxu0 0.0
    %230 = vmatprep.subr.mxu0 0.0
    %231 = vmatpush1.msra.mxu0 0.0
    %232 = vmatprep.subr.mxu0 0.0
    %233 = vmatpush1.msra.mxu0 0.0
    %234 = vmatprep.subr.mxu0 0.0
    %235 = vmatpush1.msra.mxu0 0.0
    %236 = vmatprep.subr.mxu0 0.0
    %237 = vmatpush1.msra.mxu0 0.0
    %238 = vmatprep.subr.mxu0 0.0
    %239 = vmatpush1.msra.mxu0 0.0
    %240 = vmatprep.subr.mxu0 0.0
    %241 = vmatpush1.msra.mxu0 0.0
    %242 = vmatprep.subr.mxu0 0.0
    %243 = vmatpush1.msra.mxu0 0.0
    %244 = vmatprep.subr.mxu0 0.0
    %245 = vmatpush1.msra.mxu0 0.0
    %246 = vmatprep.subr.mxu0 0.0
    %247 = vmatpush1.msra.mxu0 0.0
    %248 = vmatprep.mubr.f32.mxu0 0.0
    %v249 = vand.u32 %v28, 4294901760
    %v250 = vsub.f32 %v28, %v249
    %251 = vmatmul.mubr.f32.gmra.mrb[0].mxu0 %v250
    %v252 = vpop.f32.mrb[0].mxu0
    %v253 = vadd.f32 %v179, %v252
    %v254 = vpop.f32.mrb[0].mxu0
    %255 = vdwg.mxu0
    %256 = vmatprep.subr.mxu0 0.0
    %v257 = vand.u32 %v17, 4294901760
    %258 = vmatpush1.msra.mxu0 %v257
    %259 = vmatprep.subr.mxu0 0.0
    %260 = vmatpush1.msra.mxu0 0.0
    %261 = vmatprep.subr.mxu0 0.0
    %262 = vmatpush1.msra.mxu0 0.0
    %263 = vmatprep.subr.mxu0 0.0
    %264 = vmatpush1.msra.mxu0 0.0
    %265 = vmatprep.subr.mxu0 0.0
    %266 = vmatpush1.msra.mxu0 0.0
    %267 = vmatprep.subr.mxu0 0.0
    %268 = vmatpush1.msra.mxu0 0.0
    %269 = vmatprep.subr.mxu0 0.0
    %270 = vmatpush1.msra.mxu0 0.0
    %271 = vmatprep.subr.mxu0 0.0
    %272 = vmatpush1.msra.mxu0 0.0
    %273 = vmatprep.subr.mxu0 0.0
    %274 = vmatpush1.msra.mxu0 0.0
    %275 = vmatprep.subr.mxu0 0.0
    %276 = vmatpush1.msra.mxu0 0.0
    %277 = vmatprep.subr.mxu0 0.0
    %278 = vmatpush1.msra.mxu0 0.0
    %279 = vmatprep.subr.mxu0 0.0
    %280 = vmatpush1.msra.mxu0 0.0
    %281 = vmatprep.subr.mxu0 0.0
    %282 = vmatpush1.msra.mxu0 0.0
    %283 = vmatprep.subr.mxu0 0.0
    %284 = vmatpush1.msra.mxu0 0.0
    %285 = vmatprep.subr.mxu0 0.0
    %286 = vmatpush1.msra.mxu0 0.0
    %287 = vmatprep.subr.mxu0 0.0
    %288 = vmatpush1.msra.mxu0 0.0
    %289 = vmatprep.subr.mxu0 0.0
    %290 = vmatpush1.msra.mxu0 0.0
    %291 = vmatprep.subr.mxu0 0.0
    %292 = vmatpush1.msra.mxu0 0.0
    %293 = vmatprep.subr.mxu0 0.0
    %294 = vmatpush1.msra.mxu0 0.0
    %295 = vmatprep.subr.mxu0 0.0
    %296 = vmatpush1.msra.mxu0 0.0
    %297 = vmatprep.subr.mxu0 0.0
    %298 = vmatpush1.msra.mxu0 0.0
    %299 = vmatprep.subr.mxu0 0.0
    %300 = vmatpush1.msra.mxu0 0.0
    %301 = vmatprep.subr.mxu0 0.0
    %302 = vmatpush1.msra.mxu0 0.0
    %303 = vmatprep.subr.mxu0 0.0
    %304 = vmatpush1.msra.mxu0 0.0
    %305 = vmatprep.subr.mxu0 0.0
    %306 = vmatpush1.msra.mxu0 0.0
    %307 = vmatprep.subr.mxu0 0.0
    %308 = vmatpush1.msra.mxu0 0.0
    %309 = vmatprep.subr.mxu0 0.0
    %310 = vmatpush1.msra.mxu0 0.0
    %311 = vmatprep.subr.mxu0 0.0
    %312 = vmatpush1.msra.mxu0 0.0
    %313 = vmatprep.subr.mxu0 0.0
    %314 = vmatpush1.msra.mxu0 0.0
    %315 = vmatprep.subr.mxu0 0.0
    %316 = vmatpush1.msra.mxu0 0.0
    %317 = vmatprep.subr.mxu0 0.0
    %318 = vmatpush1.msra.mxu0 0.0
    %319 = vmatprep.subr.mxu0 0.0
    %320 = vmatpush1.msra.mxu0 0.0
    %321 = vmatprep.mubr.f32.mxu0 0.0
    %v322 = vand.u32 %v28, 4294901760
    %v323 = vsub.f32 %v28, %v322
    %v324 = vand.u32 %v323, 4294901760
    %325 = vmatmul.mubr.f32.gmra.mrb[0].mxu0 %v324
    %v326 = vpop.f32.mrb[0].mxu0
    %v327 = vadd.f32 %v253, %v326
    %v328 = vpop.f32.mrb[0].mxu0
    %329 = vdwg.mxu0
    %330 = vmatprep.subr.mxu0 0.0
    %v331 = vand.u32 %v17, 4294901760
    %v332 = vsub.f32 %v17, %v331
    %v333 = vand.u32 %v332, 4294901760
    %334 = vmatpush1.msra.mxu0 %v333
    %335 = vmatprep.subr.mxu0 0.0
    %336 = vmatpush1.msra.mxu0 0.0
    %337 = vmatprep.subr.mxu0 0.0
    %338 = vmatpush1.msra.mxu0 0.0
    %339 = vmatprep.subr.mxu0 0.0
    %340 = vmatpush1.msra.mxu0 0.0
    %341 = vmatprep.subr.mxu0 0.0
    %342 = vmatpush1.msra.mxu0 0.0
    %343 = vmatprep.subr.mxu0 0.0
    %344 = vmatpush1.msra.mxu0 0.0
    %345 = vmatprep.subr.mxu0 0.0
    %346 = vmatpush1.msra.mxu0 0.0
    %347 = vmatprep.subr.mxu0 0.0
    %348 = vmatpush1.msra.mxu0 0.0
    %349 = vmatprep.subr.mxu0 0.0
    %350 = vmatpush1.msra.mxu0 0.0
    %351 = vmatprep.subr.mxu0 0.0
    %352 = vmatpush1.msra.mxu0 0.0
    %353 = vmatprep.subr.mxu0 0.0
    %354 = vmatpush1.msra.mxu0 0.0
    %355 = vmatprep.subr.mxu0 0.0
    %356 = vmatpush1.msra.mxu0 0.0
    %357 = vmatprep.subr.mxu0 0.0
    %358 = vmatpush1.msra.mxu0 0.0
    %359 = vmatprep.subr.mxu0 0.0
    %360 = vmatpush1.msra.mxu0 0.0
    %361 = vmatprep.subr.mxu0 0.0
    %362 = vmatpush1.msra.mxu0 0.0
    %363 = vmatprep.subr.mxu0 0.0
    %364 = vmatpush1.msra.mxu0 0.0
    %365 = vmatprep.subr.mxu0 0.0
    %366 = vmatpush1.msra.mxu0 0.0
    %367 = vmatprep.subr.mxu0 0.0
    %368 = vmatpush1.msra.mxu0 0.0
    %369 = vmatprep.subr.mxu0 0.0
    %370 = vmatpush1.msra.mxu0 0.0
    %371 = vmatprep.subr.mxu0 0.0
    %372 = vmatpush1.msra.mxu0 0.0
    %373 = vmatprep.subr.mxu0 0.0
    %374 = vmatpush1.msra.mxu0 0.0
    %375 = vmatprep.subr.mxu0 0.0
    %376 = vmatpush1.msra.mxu0 0.0
    %377 = vmatprep.subr.mxu0 0.0
    %378 = vmatpush1.msra.mxu0 0.0
    %379 = vmatprep.subr.mxu0 0.0
    %380 = vmatpush1.msra.mxu0 0.0
    %381 = vmatprep.subr.mxu0 0.0
    %382 = vmatpush1.msra.mxu0 0.0
    %383 = vmatprep.subr.mxu0 0.0
    %384 = vmatpush1.msra.mxu0 0.0
    %385 = vmatprep.subr.mxu0 0.0
    %386 = vmatpush1.msra.mxu0 0.0
    %387 = vmatprep.subr.mxu0 0.0
    %388 = vmatpush1.msra.mxu0 0.0
    %389 = vmatprep.subr.mxu0 0.0
    %390 = vmatpush1.msra.mxu0 0.0
    %391 = vmatprep.subr.mxu0 0.0
    %392 = vmatpush1.msra.mxu0 0.0
    %393 = vmatprep.subr.mxu0 0.0
    %394 = vmatpush1.msra.mxu0 0.0
    %395 = vmatprep.subr.mxu0 0.0
    %396 = vmatpush1.msra.mxu0 0.0
    %397 = vmatprep.mubr.f32.mxu0 0.0
    %v398 = vand.u32 %v28, 4294901760
    %399 = vmatmul.mubr.f32.gmra.mrb[0].mxu0 %v398
    %v400 = vpop.f32.mrb[0].mxu0
    %v401 = vadd.f32 %v327, %v400
    %v402 = vpop.f32.mrb[0].mxu0
    %403 = vdwg.mxu0
    %404 = vmatprep.subr.mxu0 0.0
    %v405 = vand.u32 %v17, 4294901760
    %406 = vmatpush1.msra.mxu0 %v405
    %407 = vmatprep.subr.mxu0 0.0
    %408 = vmatpush1.msra.mxu0 0.0
    %409 = vmatprep.subr.mxu0 0.0
    %410 = vmatpush1.msra.mxu0 0.0
    %411 = vmatprep.subr.mxu0 0.0
    %412 = vmatpush1.msra.mxu0 0.0
    %413 = vmatprep.subr.mxu0 0.0
    %414 = vmatpush1.msra.mxu0 0.0
    %415 = vmatprep.subr.mxu0 0.0
    %416 = vmatpush1.msra.mxu0 0.0
    %417 = vmatprep.subr.mxu0 0.0
    %418 = vmatpush1.msra.mxu0 0.0
    %419 = vmatprep.subr.mxu0 0.0
    %420 = vmatpush1.msra.mxu0 0.0
    %421 = vmatprep.subr.mxu0 0.0
    %422 = vmatpush1.msra.mxu0 0.0
    %423 = vmatprep.subr.mxu0 0.0
    %424 = vmatpush1.msra.mxu0 0.0
    %425 = vmatprep.subr.mxu0 0.0
    %426 = vmatpush1.msra.mxu0 0.0
    %427 = vmatprep.subr.mxu0 0.0
    %428 = vmatpush1.msra.mxu0 0.0
    %429 = vmatprep.subr.mxu0 0.0
    %430 = vmatpush1.msra.mxu0 0.0
    %431 = vmatprep.subr.mxu0 0.0
    %432 = vmatpush1.msra.mxu0 0.0
    %433 = vmatprep.subr.mxu0 0.0
    %434 = vmatpush1.msra.mxu0 0.0
    %435 = vmatprep.subr.mxu0 0.0
    %436 = vmatpush1.msra.mxu0 0.0
    %437 = vmatprep.subr.mxu0 0.0
    %438 = vmatpush1.msra.mxu0 0.0
    %439 = vmatprep.subr.mxu0 0.0
    %440 = vmatpush1.msra.mxu0 0.0
    %441 = vmatprep.subr.mxu0 0.0
    %442 = vmatpush1.msra.mxu0 0.0
    %443 = vmatprep.subr.mxu0 0.0
    %444 = vmatpush1.msra.mxu0 0.0
    %445 = vmatprep.subr.mxu0 0.0
    %446 = vmatpush1.msra.mxu0 0.0
    %447 = vmatprep.subr.mxu0 0.0
    %448 = vmatpush1.msra.mxu0 0.0
    %449 = vmatprep.subr.mxu0 0.0
    %450 = vmatpush1.msra.mxu0 0.0
    %451 = vmatprep.subr.mxu0 0.0
    %452 = vmatpush1.msra.mxu0 0.0
    %453 = vmatprep.subr.mxu0 0.0
    %454 = vmatpush1.msra.mxu0 0.0
    %455 = vmatprep.subr.mxu0 0.0
    %456 = vmatpush1.msra.mxu0 0.0
    %457 = vmatprep.subr.mxu0 0.0
    %458 = vmatpush1.msra.mxu0 0.0
    %459 = vmatprep.subr.mxu0 0.0
    %460 = vmatpush1.msra.mxu0 0.0
    %461 = vmatprep.subr.mxu0 0.0
    %462 = vmatpush1.msra.mxu0 0.0
    %463 = vmatprep.subr.mxu0 0.0
    %464 = vmatpush1.msra.mxu0 0.0
    %465 = vmatprep.subr.mxu0 0.0
    %466 = vmatpush1.msra.mxu0 0.0
    %467 = vmatprep.subr.mxu0 0.0
    %468 = vmatpush1.msra.mxu0 0.0
    %469 = vmatprep.mubr.f32.mxu0 0.0
    %v470 = vand.u32 %v28, 4294901760
    %471 = vmatmul.mubr.f32.gmra.mrb[0].mxu0 %v470
    %v472 = vpop.f32.mrb[0].mxu0
    %v473 = vadd.f32 %v401, %v472
    %v474 = vpop.f32.mrb[0].mxu0
    %475 = vdwg.mxu0
    %v476 = vsub.f32 %v15, %v473
    %v477 = vmul.f32 %v476, %v476
    %vm478 = vcmask 261120
    %v479 = vsel %vm478, %v477, 0.0
    %480 = vadd.xlane.f32.xlu0 %v479
    %v481 = vpop.xlane.xlu0 %480
    %v482 = vmax.f32 %v481, 1e-12
    %v483 = vmin.f32 %v482, 1e+12
    %vm484 = vcmp.ge.s32.totalorder %v16, 0
    %vm485 = vcmp.lt.s32.totalorder %v16, 8
    %vm486 = vmand %vm484, %vm485
    %v487 = vsel %vm486, %v483, 1e-12
    %vm488 = vcmask 7168
    %v489 = vsel %vm488, %v487, 0.0
    %490 = vadd.xlane.f32.xlu0 %v489
    %v491 = vpop.xlane.xlu0 %490
    %v492 = vrot.slane %v491, 4
    %v493 = vadd.f32 %v491, %v492
    %v494 = vrot.slane %v493, 2
    %v495 = vadd.f32 %v493, %v494
    %v496 = vrot.slane %v495, 1
    %v497 = vadd.f32 %v495, %v496
    %s498 = vtos %v497
    %s499 = scalar_lea.smem [#allocation2], 0
    %500 = sst [smem:[%s499]] %s498
    // Predicated region
    $region14: #{tpu_custom_call.1} parent=1 // pred_check
      _
    $region15: #{tpu_custom_call.1} parent=1 // pred_check_branch
      %502 = sbr.rel (0) target = $region17
    $region16: #{tpu_custom_call.1} parent=1 // pred_region
      %s504 = ssub.s32 16, 16
      %505 = vsyncadd [#allocation3], %s504
      %508 = dma.smem_to_hbm [#allocation2], 16, %s3, [#allocation3]
    $region17: #{tpu_custom_call.1} parent=1 // pred_fallthru
      _
    // Predicated region
    $region18: #{tpu_custom_call.1} parent=1 // pred_check
      _
    $region19: #{tpu_custom_call.1} parent=1 // pred_check_branch
      %510 = sbr.rel (0) target = $region21
    $region20: #{tpu_custom_call.1} parent=1 // pred_region
      %511 = dma.done [#allocation3], 16
    $region21: #{tpu_custom_call.1} parent=1 // pred_fallthru
      _
    %512 = sfence
    %513 = vsyncpa [#allocation3], 1

</llo_original>
